<compile_context>
chip_gen: v7x
topology: tpu7x:2x2x1
jax: 0.10.0
libtpu: 0.0.40
codegen_flags: <defaults>
</compile_context>

<pallas_src>
import functools

import jax
import jax.numpy as jnp
from jax.experimental import pallas as pl
from jax.experimental.pallas import tpu as pltpu


def _odefunc_kernel(y_ref, w1_ref, b1_ref, w2_ref, b2_ref, o_ref, *, use_bf16):
    # y_ref:  (N2, TB)  -- batch on lanes (lane-dense)
    # w1_ref: (H,  N2), b1_ref: (H, 1)
    # w2_ref: (N2, H ), b2_ref: (N2, 1)
    y = y_ref[...]
    w1 = w1_ref[...]
    w2 = w2_ref[...]
    if use_bf16:
        # bf16 MXU inputs, f32 accumulation (v6e/v7x bf16-native MXU path).
        y = y.astype(jnp.bfloat16)
        w1 = w1.astype(jnp.bfloat16)
        w2 = w2.astype(jnp.bfloat16)
    h = jnp.dot(w1, y, preferred_element_type=jnp.float32)      # (H, TB)
    h = jnp.maximum(h + b1_ref[...], 0.0)                        # bias + ReLU (VPU, f32)
    if use_bf16:
        h = h.astype(jnp.bfloat16)
    out = jnp.dot(w2, h, preferred_element_type=jnp.float32)     # (N2, TB)
    o_ref[...] = (out + b2_ref[...]).astype(o_ref.dtype)


def _round_up(x, m):
    return -(-x // m) * m


def odefunc_forward_t(t, y_t, w1, b1, w2, b2, *,
                      max_block_b=8192, min_grid_steps=2, use_bf16=False):
    """Transpose-free solver API: state in lane-dense (N2, B) layout.

    Args:
      t:   unused scalar time (kept for parity with the PyTorch module).
      y_t: (N2, B) float32 state batch (batch on the lane axis).
      w1:  (N2, H) float32 (transpose of torch's (H, N2) Linear weight), b1: (1, H).
      w2:  (H, N2) float32,                                              b2: (1, N2).
      max_block_b:    cap on the lane tile over the batch axis (multiple of 128).
      min_grid_steps: keep at least this many grid steps when the batch spans
                      >= that many lane tiles (lets v7x's 2 TCs split the work).
      use_bf16: cast matmul inputs to bf16 (f32 accumulate) — for v6e/v7x.
    Returns:
      (N2, B) float32.
    """
    del t  # the PyTorch module ignores t
    N2, B = y_t.shape
    H = w1.shape[1]

    w1_t = w1.T                 # (H, N2)   h   = w1_t @ y_t
    w2_t = w2.T                 # (N2, H)   out = w2_t @ h
    b1_c = b1.reshape(H, 1)     # broadcast along lanes
    b2_c = b2.reshape(N2, 1)

    # --- batch tiling: as few, as large, grid steps as possible ----------------
    lane_tiles = -(-B // 128)                       # number of 128-lane tiles
    max_tiles_per_block = max(max_block_b // 128, 1)
    num_blocks = -(-lane_tiles // max_tiles_per_block)
    if num_blocks < min_grid_steps and lane_tiles >= min_grid_steps:
        # Keep >=2 independent tiles so v7x's two TensorCores both get work;
        # on v5e/v6e the extra step is ~0.35 us (noise).
        num_blocks = min_grid_steps
    block_b = (-(-lane_tiles // num_blocks)) * 128
    b_pad = num_blocks * block_b

    if b_pad != B:
        # Padded columns produce ReLU(b1)+b2 garbage; they are sliced off below.
        y_t = jnp.pad(y_t, ((0, 0), (0, b_pad - B)))

    kernel = functools.partial(_odefunc_kernel, use_bf16=use_bf16)

    out_t = pl.pallas_call(
        kernel,
        out_shape=jax.ShapeDtypeStruct((N2, b_pad), jnp.float32),
        grid_spec=pltpu.PrefetchScalarGridSpec(
            num_scalar_prefetch=0,
            grid=(num_blocks,),
            in_specs=[
                # y: tiled over the batch (lane) axis.
                pl.BlockSpec((N2, block_b), lambda i: (0, i)),
                # Weights / biases: pinned at block (0,0) -> DMA'd once,
                # VMEM-resident across the whole grid.
                pl.BlockSpec((H, N2), lambda i: (0, 0)),
                pl.BlockSpec((H, 1), lambda i: (0, 0)),
                pl.BlockSpec((N2, H), lambda i: (0, 0)),
                pl.BlockSpec((N2, 1), lambda i: (0, 0)),
            ],
            out_specs=pl.BlockSpec((N2, block_b), lambda i: (0, i)),
        ),
        compiler_params=pltpu.CompilerParams(
            # Independent batch tiles: lets v7x split the grid across its 2 TCs.
            dimension_semantics=("parallel",),
        ),
    )(y_t, w1_t, b1_c, w2_t, b2_c)

    return out_t[:, :B]


def odefunc_forward(t, y, w1, b1, w2, b2, **kwargs):
    """PyTorch-layout compatibility wrapper: y is (B, N2), returns (B, N2).

    Note: the two transposes here are boundary-only XLA ops; solvers should
    prefer odefunc_forward_t() and keep their state in (N2, B) layout to avoid
    paying them on every f(t, y) evaluation.
    """
    return odefunc_forward_t(t, y.T, w1, b1, w2, b2, **kwargs).T


def init_params(seed, n2, nhidden):
    """Deterministic init matching the PyTorch module:
    weights ~ Normal(0, 0.1), biases = 0."""
    key = jax.random.PRNGKey(seed)
    k1, k2 = jax.random.split(key)
    # Stored as (in, out) — i.e. transpose of torch's (out, in) Linear weight.
    w1 = 0.1 * jax.random.normal(k1, (n2, nhidden), dtype=jnp.float32)
    b1 = jnp.zeros((1, nhidden), dtype=jnp.float32)
    w2 = 0.1 * jax.random.normal(k2, (nhidden, n2), dtype=jnp.float32)
    b2 = jnp.zeros((1, n2), dtype=jnp.float32)
    return w1, b1, w2, b2


if __name__ == "__main__":
    # Shapes implied by the module: N_ pendulums -> N2 = 2*N_ features,
    # nhidden hidden units.  Batch chosen to exercise padding + the >=2-block split.
    N_ = 8
    N2 = 2 * N_      # 16
    NHIDDEN = 32
    BATCH = 300      # pads to 2 blocks of 256 lanes

    key = jax.random.PRNGKey(0)
    y = jax.random.normal(key, (BATCH, N2), dtype=jnp.float32)
    t = jnp.float32(0.0)

    w1, b1, w2, b2 = init_params(seed=0, n2=N2, nhidden=NHIDDEN)

    # Pure-JAX reference (matches the PyTorch forward).
    ref = jnp.maximum(y @ w1 + b1, 0.0) @ w2 + b2

    # 1) PyTorch-layout wrapper, f32.
    out = jax.block_until_ready(odefunc_forward(t, y, w1, b1, w2, b2))
    assert out.shape == (BATCH, N2)
    assert jnp.allclose(out, ref, atol=1e-5, rtol=1e-5), (
        f"f32 max abs err {jnp.max(jnp.abs(out - ref))}")

    # 2) Transpose-free solver API, f32.
    out_t = jax.block_until_ready(odefunc_forward_t(t, y.T, w1, b1, w2, b2))
    assert out_t.shape == (N2, BATCH)
    assert jnp.allclose(out_t, ref.T, atol=1e-5, rtol=1e-5), (
        f"f32(T) max abs err {jnp.max(jnp.abs(out_t - ref.T))}")

    # 3) bf16 MXU inputs (f32 accumulate) — v6e/v7x fast path, loose tolerance.
    out_bf16 = jax.block_until_ready(
        odefunc_forward(t, y, w1, b1, w2, b2, use_bf16=True))
    assert jnp.allclose(out_bf16, ref, atol=5e-2, rtol=5e-2), (
        f"bf16 max abs err {jnp.max(jnp.abs(out_bf16 - ref))}")

    print("KERNEL_OK")
</pallas_src>

<mosaic_0001>
module attributes {stable_mosaic.version = 11 : i64} {
  func.func @_odefunc_kernel(%arg0: i32, %arg1: memref<16x256xf32, #tpu.memory_space<vmem>>, %arg2: memref<32x16xf32, #tpu.memory_space<vmem>>, %arg3: memref<32x1xf32, #tpu.memory_space<vmem>>, %arg4: memref<16x32xf32, #tpu.memory_space<vmem>>, %arg5: memref<16x1xf32, #tpu.memory_space<vmem>>, %arg6: memref<16x256xf32, #tpu.memory_space<vmem>>) attributes {dimension_semantics = [#tpu.dimension_semantics<parallel>], iteration_bounds = array<i64: 2>, scalar_prefetch = 0 : i64, scratch_operands = 0 : i64, tpu.core_type = #tpu.core_type<tc>, window_params = [{transform_indices = @transform_0, window_bounds = array<i64: 16, 256>}, {pipeline_mode = #tpu.pipeline_mode<synchronous>, transform_indices = @transform_1, window_bounds = array<i64: 32, 16>}, {pipeline_mode = #tpu.pipeline_mode<synchronous>, transform_indices = @transform_2, window_bounds = array<i64: 32, 1>}, {pipeline_mode = #tpu.pipeline_mode<synchronous>, transform_indices = @transform_3, window_bounds = array<i64: 16, 32>}, {pipeline_mode = #tpu.pipeline_mode<synchronous>, transform_indices = @transform_4, window_bounds = array<i64: 16, 1>}, {transform_indices = @transform_5, window_bounds = array<i64: 16, 256>}]} {
    %c0 = arith.constant 0 : index
    %c0_0 = arith.constant 0 : index
    %0 = vector.load %arg1[%c0, %c0_0] : memref<16x256xf32, #tpu.memory_space<vmem>>, vector<16x256xf32>
    %c0_1 = arith.constant 0 : index
    %c0_2 = arith.constant 0 : index
    %1 = vector.load %arg2[%c0_1, %c0_2] : memref<32x16xf32, #tpu.memory_space<vmem>>, vector<32x16xf32>
    %c0_3 = arith.constant 0 : index
    %c0_4 = arith.constant 0 : index
    %2 = vector.load %arg4[%c0_3, %c0_4] : memref<16x32xf32, #tpu.memory_space<vmem>>, vector<16x32xf32>
    %cst = arith.constant dense<0.000000e+00> : vector<32x256xf32>
    %3 = tpu.matmul %1, %0, %cst {dimension_numbers = #tpu.dot_dimension_numbers<[1], [0], [0], [1], [0, 0, 1, 1], [], []>} : vector<32x16xf32>, vector<16x256xf32>, vector<32x256xf32> -> vector<32x256xf32>
    %c0_5 = arith.constant 0 : index
    %c0_6 = arith.constant 0 : index
    %4 = vector.load %arg3[%c0_5, %c0_6] : memref<32x1xf32, #tpu.memory_space<vmem>>, vector<32x1xf32>
    %5 = vector.broadcast %4 : vector<32x1xf32> to vector<32x256xf32>
    %6 = arith.addf %3, %5 : vector<32x256xf32>
    %cst_7 = arith.constant 0.000000e+00 : f32
    %7 = vector.broadcast %cst_7 : f32 to vector<32x256xf32>
    %8 = arith.maximumf %6, %7 : vector<32x256xf32>
    %cst_8 = arith.constant dense<0.000000e+00> : vector<16x256xf32>
    %9 = tpu.matmul %2, %8, %cst_8 {dimension_numbers = #tpu.dot_dimension_numbers<[1], [0], [0], [1], [0, 0, 1, 1], [], []>} : vector<16x32xf32>, vector<32x256xf32>, vector<16x256xf32> -> vector<16x256xf32>
    %c0_9 = arith.constant 0 : index
    %c0_10 = arith.constant 0 : index
    %10 = vector.load %arg5[%c0_9, %c0_10] : memref<16x1xf32, #tpu.memory_space<vmem>>, vector<16x1xf32>
    %11 = vector.broadcast %10 : vector<16x1xf32> to vector<16x256xf32>
    %12 = arith.addf %9, %11 : vector<16x256xf32>
    %c0_11 = arith.constant 0 : index
    %c0_12 = arith.constant 0 : index
    %13 = vector.load %arg6[%c0_11, %c0_12] : memref<16x256xf32, #tpu.memory_space<vmem>>, vector<16x256xf32>
    tpu.vector_store %arg6[%c0_11, %c0_12], %12 {strides = array<i32>} : memref<16x256xf32, #tpu.memory_space<vmem>>, vector<16x256xf32>,
    return
  }
  func.func @transform_0(%arg0: i32) -> (i32, i32) {
    %c0_i32 = arith.constant 0 : i32
    %c0_i32_0 = arith.constant 0 : i32
    return %c0_i32, %arg0 : i32, i32
  }
  func.func @transform_1(%arg0: i32) -> (i32, i32) {
    %c0_i32 = arith.constant 0 : i32
    %c0_i32_0 = arith.constant 0 : i32
    %c0_i32_1 = arith.constant 0 : i32
    return %c0_i32, %c0_i32_0 : i32, i32
  }
  func.func @transform_2(%arg0: i32) -> (i32, i32) {
    %c0_i32 = arith.constant 0 : i32
    %c0_i32_0 = arith.constant 0 : i32
    %c0_i32_1 = arith.constant 0 : i32
    return %c0_i32, %c0_i32_0 : i32, i32
  }
  func.func @transform_3(%arg0: i32) -> (i32, i32) {
    %c0_i32 = arith.constant 0 : i32
    %c0_i32_0 = arith.constant 0 : i32
    %c0_i32_1 = arith.constant 0 : i32
    return %c0_i32, %c0_i32_0 : i32, i32
  }
  func.func @transform_4(%arg0: i32) -> (i32, i32) {
    %c0_i32 = arith.constant 0 : i32
    %c0_i32_0 = arith.constant 0 : i32
    %c0_i32_1 = arith.constant 0 : i32
    return %c0_i32, %c0_i32_0 : i32, i32
  }
  func.func @transform_5(%arg0: i32) -> (i32, i32) {
    %c0_i32 = arith.constant 0 : i32
    %c0_i32_0 = arith.constant 0 : i32
    return %c0_i32, %arg0 : i32, i32
  }
}

</mosaic_0001>

<llo_original>
// kernel: tpu_custom_call.1
$region0: #{tpu_custom_call.1}
  #allocation0 [shape = 'u32[]', space=smem, size = 0x4, offset = 0x4, fixed_abs, tag = 'smem constant byte address 0x4 - core index']
  #allocation1 [shape = 'u32[144,128]{1,0:T(1,128)}', space=vmem, size = 0x12000, scoped, tag = 'internal scratch']
  %s0 = inlined_call_operand.vmem [shape: f32[16,512], index: 0, kind: input, shape index: {}]
  %s1 = inlined_call_operand.vmem [shape: f32[32,16], index: 1, kind: input, shape index: {}]
  %s2 = inlined_call_operand.vmem [shape: f32[32,1], index: 2, kind: input, shape index: {}]
  %s3 = inlined_call_operand.vmem [shape: f32[16,32], index: 3, kind: input, shape index: {}]
  %s4 = inlined_call_operand.vmem [shape: f32[16,1], index: 4, kind: input, shape index: {}]
  %s5 = inlined_call_operand.hbm [shape: f32[16,512], index: 5, kind: output, shape index: {}]
  %s6 = sld [smem:[#allocation0]]
  $region76: #{tpu_custom_call.1} parent=0
    _
  %s8 = ssub.s32 1, %s6
  %s9 = scalar_select 0, %s8, %s6
  $region1: #{tpu_custom_call.1} parent=0
    #allocation2 [shape = 'u8[32768]{0}', space=vmem, size = 0x8000, scoped, tag = 'input window, operand 0']
    #allocation3 [shape = 'u8[32768]{0}', space=vmem, size = 0x8000, scoped, tag = 'output window, operand 0']
    #allocation4 [shape = 's32[2]{0}', space=sflag, size = 0x8, scoped, tag = 'scoped memory for tpu_custom_call.1']
    %10 = vsyncpa [#allocation4], 0
    %s11 = scalar_lea.sflag [#allocation4], 1
    %12 = vsyncpa %s11, 0
    loop: start=0, step=1, limit=4
    $region2: #{tpu_custom_call.1} parent=1 // loop_pre_header
      _
    $region3: #{tpu_custom_call.1} parent=1 // loop_header
      %s14 = sphi 0, %s18
      %p15 = scmp.ge.s32.totalorder %s14, 4
      %s24 = sphi 0, %s26
      %s27 = sphi 0, %s24
      %s28 = sphi 0, %s27
      %s44 = sphi 0, %s28
      %s48 = sphi 0, %s48
      %s50 = sphi 0, %s48
      %s51 = sphi 0, %s50
      %s65 = sphi 0, %s51
      %s69 = sphi 0, %s69
      %s71 = sphi 0, %s69
      %s72 = sphi 0, %s71
      %s86 = sphi 0, %s72
      %s90 = sphi 0, %s90
      %s92 = sphi 0, %s90
      %s93 = sphi 0, %s92
      %s107 = sphi 0, %s93
      %s111 = sphi 0, %s111
      %s113 = sphi 0, %s111
      %s114 = sphi 0, %s113
      %s128 = sphi 0, %s114
      %s134 = sphi 0, %s136
      %s137 = sphi 0, %s134
      %s138 = sphi 0, %s137
      %s154 = sphi 0, %s138
    $region4: #{tpu_custom_call.1} parent=1 // loop_header_branch
      %17 = sbr.rel (%p15) target = $region8
    $region5: #{tpu_custom_call.1} parent=1 // loop_body
      %s19 = ssub.s32 %s14, 1
      %s20 = ssub.s32 %s14, 2
      %s21 = sadd.s32 %s14, 1
      %s22 = ssub.s32 %s14, %s21
      %p23 = scmp.eq.s32.totalorder %s22, 0
      %s25 = sadd.s32 %s24, 1
      %s26 = scalar_select %p23, %s24, %s25
      %p29 = pneg %p23
      %p30 = scmp.eq.s32.totalorder %s14, 1
      %p31 = por %p29, %p30
      %p32 = scmp.ne.s32.totalorder %s24, %s27
      %p33 = scmp.eq.s32.totalorder %s14, 0
      %p34 = por %p32, %p33
      %p35 = scmp.ne.s32.totalorder %s24, %s27
      %p36 = scmp.eq.s32.totalorder %s19, 1
      %p37 = por %p35, %p36
      %p38 = scmp.ne.s32.totalorder %s27, %s28
      %p39 = scmp.eq.s32.totalorder %s19, 0
      %p40 = por %p38, %p39
      %p41 = scmp.ne.s32.totalorder %s27, %s28
      %p42 = scmp.eq.s32.totalorder %s20, 1
      %p43 = por %p41, %p42
      %p45 = scmp.ne.s32.totalorder %s28, %s44
      %p46 = scmp.eq.s32.totalorder %s20, 0
      %p47 = por %p45, %p46
      %s49 = sadd.s32 %s48, 1
      %p52 = scmp.eq.s32.totalorder %s14, 1
      %p53 = scmp.ne.s32.totalorder %s48, %s50
      %p54 = scmp.eq.s32.totalorder %s14, 0
      %p55 = por %p53, %p54
      %p56 = scmp.ne.s32.totalorder %s48, %s50
      %p57 = scmp.eq.s32.totalorder %s19, 1
      %p58 = por %p56, %p57
      %p59 = scmp.ne.s32.totalorder %s50, %s51
      %p60 = scmp.eq.s32.totalorder %s19, 0
      %p61 = por %p59, %p60
      %p62 = scmp.ne.s32.totalorder %s50, %s51
      %p63 = scmp.eq.s32.totalorder %s20, 1
      %p64 = por %p62, %p63
      %p66 = scmp.ne.s32.totalorder %s51, %s65
      %p67 = scmp.eq.s32.totalorder %s20, 0
      %p68 = por %p66, %p67
      %s70 = sadd.s32 %s69, 1
      %p73 = scmp.eq.s32.totalorder %s14, 1
      %p74 = scmp.ne.s32.totalorder %s69, %s71
      %p75 = scmp.eq.s32.totalorder %s14, 0
      %p76 = por %p74, %p75
      %p77 = scmp.ne.s32.totalorder %s69, %s71
      %p78 = scmp.eq.s32.totalorder %s19, 1
      %p79 = por %p77, %p78
      %p80 = scmp.ne.s32.totalorder %s71, %s72
      %p81 = scmp.eq.s32.totalorder %s19, 0
      %p82 = por %p80, %p81
      %p83 = scmp.ne.s32.totalorder %s71, %s72
      %p84 = scmp.eq.s32.totalorder %s20, 1
      %p85 = por %p83, %p84
      %p87 = scmp.ne.s32.totalorder %s72, %s86
      %p88 = scmp.eq.s32.totalorder %s20, 0
      %p89 = por %p87, %p88
      %s91 = sadd.s32 %s90, 1
      %p94 = scmp.eq.s32.totalorder %s14, 1
      %p95 = scmp.ne.s32.totalorder %s90, %s92
      %p96 = scmp.eq.s32.totalorder %s14, 0
      %p97 = por %p95, %p96
      %p98 = scmp.ne.s32.totalorder %s90, %s92
      %p99 = scmp.eq.s32.totalorder %s19, 1
      %p100 = por %p98, %p99
      %p101 = scmp.ne.s32.totalorder %s92, %s93
      %p102 = scmp.eq.s32.totalorder %s19, 0
      %p103 = por %p101, %p102
      %p104 = scmp.ne.s32.totalorder %s92, %s93
      %p105 = scmp.eq.s32.totalorder %s20, 1
      %p106 = por %p104, %p105
      %p108 = scmp.ne.s32.totalorder %s93, %s107
      %p109 = scmp.eq.s32.totalorder %s20, 0
      %p110 = por %p108, %p109
      %s112 = sadd.s32 %s111, 1
      %p115 = scmp.eq.s32.totalorder %s14, 1
      %p116 = scmp.ne.s32.totalorder %s111, %s113
      %p117 = scmp.eq.s32.totalorder %s14, 0
      %p118 = por %p116, %p117
      %p119 = scmp.ne.s32.totalorder %s111, %s113
      %p120 = scmp.eq.s32.totalorder %s19, 1
      %p121 = por %p119, %p120
      %p122 = scmp.ne.s32.totalorder %s113, %s114
      %p123 = scmp.eq.s32.totalorder %s19, 0
      %p124 = por %p122, %p123
      %p125 = scmp.ne.s32.totalorder %s113, %s114
      %p126 = scmp.eq.s32.totalorder %s20, 1
      %p127 = por %p125, %p126
      %p129 = scmp.ne.s32.totalorder %s114, %s128
      %p130 = scmp.eq.s32.totalorder %s20, 0
      %p131 = por %p129, %p130
      %s132 = ssub.s32 %s14, %s21
      %p133 = scmp.eq.s32.totalorder %s132, 0
      %s135 = sadd.s32 %s134, 1
      %s136 = scalar_select %p133, %s134, %s135
      %p139 = pneg %p133
      %p140 = scmp.eq.s32.totalorder %s14, 1
      %p141 = por %p139, %p140
      %p142 = scmp.ne.s32.totalorder %s134, %s137
      %p143 = scmp.eq.s32.totalorder %s14, 0
      %p144 = por %p142, %p143
      %p145 = scmp.ne.s32.totalorder %s134, %s137
      %p146 = scmp.eq.s32.totalorder %s19, 1
      %p147 = por %p145, %p146
      %p148 = scmp.ne.s32.totalorder %s137, %s138
      %p149 = scmp.eq.s32.totalorder %s19, 0
      %p150 = por %p148, %p149
      %p151 = scmp.ne.s32.totalorder %s137, %s138
      %p152 = scmp.eq.s32.totalorder %s20, 1
      %p153 = por %p151, %p152
      %p155 = scmp.ne.s32.totalorder %s138, %s154
      %p156 = scmp.eq.s32.totalorder %s20, 0
      %p157 = por %p155, %p156
      %p158 = scmp.le.s32.totalorder 1, %s14
      %p159 = scmp.lt.s32.totalorder %s14, 3
      %p160 = pnand %p158, %p159
      %p161 = pneg %p160
      // Predicated region
      $region9: #{tpu_custom_call.1} parent=5 // pred_check
        _
      $region10: #{tpu_custom_call.1} parent=5 // pred_check_branch
        %163 = sbr.rel (%p160) target = $region12
      $region11: #{tpu_custom_call.1} parent=5 // pred_region
        %s164 = ssub.s32 %s14, 1
        // Predicated region
        $region13: #{tpu_custom_call.1} parent=11 // pred_check
          %p165 = pneg %p61
        $region14: #{tpu_custom_call.1} parent=11 // pred_check_branch
          %167 = sbr.rel (%p165) target = $region16
        $region15: #{tpu_custom_call.1} parent=11 // pred_region
          _
        $region16: #{tpu_custom_call.1} parent=11 // pred_fallthru
          _
        // Predicated region
        $region17: #{tpu_custom_call.1} parent=11 // pred_check
          %p168 = pneg %p82
        $region18: #{tpu_custom_call.1} parent=11 // pred_check_branch
          %170 = sbr.rel (%p168) target = $region20
        $region19: #{tpu_custom_call.1} parent=11 // pred_region
          _
        $region20: #{tpu_custom_call.1} parent=11 // pred_fallthru
          _
        // Predicated region
        $region21: #{tpu_custom_call.1} parent=11 // pred_check
          %p171 = pneg %p103
        $region22: #{tpu_custom_call.1} parent=11 // pred_check_branch
          %173 = sbr.rel (%p171) target = $region24
        $region23: #{tpu_custom_call.1} parent=11 // pred_region
          _
        $region24: #{tpu_custom_call.1} parent=11 // pred_fallthru
          _
        // Predicated region
        $region25: #{tpu_custom_call.1} parent=11 // pred_check
          %p174 = pneg %p124
        $region26: #{tpu_custom_call.1} parent=11 // pred_check_branch
          %176 = sbr.rel (%p174) target = $region28
        $region27: #{tpu_custom_call.1} parent=11 // pred_region
          _
        $region28: #{tpu_custom_call.1} parent=11 // pred_fallthru
          _
      $region12: #{tpu_custom_call.1} parent=5 // pred_fallthru
        _
      %p177 = scmp.lt.s32.totalorder %s14, 2
      // Predicated region
      $region29: #{tpu_custom_call.1} parent=5 // pred_check
        %p178 = pneg %p177
      $region30: #{tpu_custom_call.1} parent=5 // pred_check_branch
        %180 = sbr.rel (%p178) target = $region32
      $region31: #{tpu_custom_call.1} parent=5 // pred_region
        // Predicated region
        $region33: #{tpu_custom_call.1} parent=31 // pred_check
          %p181 = pneg %p34
        $region34: #{tpu_custom_call.1} parent=31 // pred_check_branch
          %183 = sbr.rel (%p181) target = $region36
        $region35: #{tpu_custom_call.1} parent=31 // pred_region
          %s184 = sand.u32 %s24, 1
          %s185 = sand.u32 %s24, 1
          %s186 = smul.addr %s185, 32
          %s187 = scalar_lea.vmem [#allocation2], %s186
          %s188 = smul.u32 2, %s14
          %s189 = smul.addr %s188, 8
          %s190 = scalar_lea.vmem %s0, %s189
          // Predicated region
          $region37: #{tpu_custom_call.1} parent=35 // pred_check
            _
          $region38: #{tpu_custom_call.1} parent=35 // pred_check_branch
            %192 = sbr.rel (0) target = $region40
          $region39: #{tpu_custom_call.1} parent=35 // pred_region
            // Predicated region
            $region41: #{tpu_custom_call.1} parent=39 // pred_check
              _
            $region42: #{tpu_custom_call.1} parent=39 // pred_check_branch
              %194 = sbr.rel (0) target = $region44
            $region43: #{tpu_custom_call.1} parent=39 // pred_region
              loop: start=0, step=1, limit=1
              $region45: #{tpu_custom_call.1} parent=43 // loop_pre_header
                _
              $region46: #{tpu_custom_call.1} parent=43 // loop_header
                %s196 = sphi 0, %s200
                %p197 = scmp.ge.s32.totalorder %s196, 1
                %s201 = sphi %s190, %s190
                %s202 = sphi %s187, %s187
              $region47: #{tpu_custom_call.1} parent=43 // loop_header_branch
                %199 = sbr.rel (%p197) target = $region51
              $region48: #{tpu_custom_call.1} parent=43 // loop_body
                %v203 = vld [vmem:[%s201] sm:$0xff]
                %204 = vst [vmem:[%s202] sm:$0xff] %v203
                %v205 = vld [vmem:[%s201 + $0x8] sm:$0xff]
                %206 = vst [vmem:[%s202 + $0x8] sm:$0xff] %v205
                %v207 = vld [vmem:[%s201 + $0x20] sm:$0xff]
                %208 = vst [vmem:[%s202 + $0x10] sm:$0xff] %v207
                %v209 = vld [vmem:[%s201 + $0x28] sm:$0xff]
                %210 = vst [vmem:[%s202 + $0x18] sm:$0xff] %v209
              $region49: #{tpu_custom_call.1} parent=43 // loop_footer
                %s200 = sadd.s32 1, %s196
              $region50: #{tpu_custom_call.1} parent=43 // loop_footer_branch
                %195 = sbr.rel target = $region46
              $region51: #{tpu_custom_call.1} parent=43 // loop_exit
                _
            $region44: #{tpu_custom_call.1} parent=39 // pred_fallthru
              _
            // Predicated region
            $region52: #{tpu_custom_call.1} parent=39 // pred_check
              _
            $region53: #{tpu_custom_call.1} parent=39 // pred_check_branch
              %212 = sbr.rel target = $region55
            $region54: #{tpu_custom_call.1} parent=39 // pred_region
              _
            $region55: #{tpu_custom_call.1} parent=39 // pred_fallthru
              _
          $region40: #{tpu_custom_call.1} parent=35 // pred_fallthru
            _
          %213 = vnop
        $region36: #{tpu_custom_call.1} parent=31 // pred_fallthru
          _
      $region32: #{tpu_custom_call.1} parent=5 // pred_fallthru
        _
      %p214 = scmp.le.s32.totalorder 1, %s14
      %p215 = scmp.lt.s32.totalorder %s14, 3
      %p216 = pnand %p214, %p215
      %p217 = pneg %p216
      // Predicated region
      $region56: #{tpu_custom_call.1} parent=5 // pred_check
        _
      $region57: #{tpu_custom_call.1} parent=5 // pred_check_branch
        %219 = sbr.rel (%p216) target = $region59
      $region58: #{tpu_custom_call.1} parent=5 // pred_region
        %s220 = ssub.s32 %s14, 1
        %s221 = sand.u32 %s27, 1
        %s222 = sand.u32 %s27, 1
        %s223 = smul.addr %s222, 32
        %s224 = scalar_lea.vmem [#allocation2], %s223
        // Predicated region
        $region60: #{tpu_custom_call.1} parent=58 // pred_check
          %p225 = pneg %p40
        $region61: #{tpu_custom_call.1} parent=58 // pred_check_branch
          %227 = sbr.rel (%p225) target = $region63
        $region62: #{tpu_custom_call.1} parent=58 // pred_region
          _
        $region63: #{tpu_custom_call.1} parent=58 // pred_fallthru
          _
        %s228 = sand.u32 %s27, 1
        %s229 = sand.u32 %s27, 1
        %s230 = smul.addr %s229, 32
        %s231 = scalar_lea.vmem [#allocation2], %s230
        %p232 = pneg %p40
        %p233 = pneg %p37
        %p234 = pneg %p61
        %p235 = pneg %p58
        %p236 = pneg %p82
        %p237 = pneg %p79
        %p238 = pneg %p103
        %p239 = pneg %p100
        %p240 = pneg %p124
        %p241 = pneg %p121
        %p242 = pneg %p150
        %p243 = pneg %p147
        %s244 = sand.u32 %s137, 1
        %s245 = scalar_lea.sflag [#allocation4], %s244
        %s246 = sand.u32 %s137, 1
        %s247 = smul.addr %s246, 32
        %s248 = scalar_lea.vmem [#allocation3], %s247
        %s249 = smul.u32 2, %s19
        %s250 = smul.u32 2, %s19
        %v251 = vld [vmem:[%s224] sm:$0xff]
        %v252 = vld [vmem:[%s224 + $0x8] sm:$0xff]
        %v253 = vld [vmem:[%s224 + $0x10] sm:$0xff]
        %v254 = vld [vmem:[%s224 + $0x18] sm:$0xff]
        %v255 = vld [vmem:[%s1] sm:$0xff]
        %v256 = vld [vmem:[%s1 + $0x8] sm:$0xff]
        %v257 = vld [vmem:[%s1 + $0x10] sm:$0xff]
        %v258 = vld [vmem:[%s1 + $0x18] sm:$0xff]
        %v259 = vld [vmem:[%s3] sm:$0xff]
        %v260 = vld [vmem:[%s3 + $0x8] sm:$0xff]
        %v261 = vld [vmem:[%s2] sm:$0xff]
        %v262 = vld [vmem:[%s2 + $0x8] sm:$0xff]
        %v263 = vld [vmem:[%s2 + $0x10] sm:$0xff]
        %v264 = vld [vmem:[%s2 + $0x18] sm:$0xff]
        %266 = vset.pattern.permute.xlu0 0
        %267 = vperm.xlu0 %266, %v261
        %v268 = vpop.permute.xlu0 %267
        %271 = vset.pattern.permute.xlu0 0
        %272 = vperm.xlu0 %271, %v262
        %v273 = vpop.permute.xlu0 %272
        %276 = vset.pattern.permute.xlu0 0
        %277 = vperm.xlu0 %276, %v263
        %v278 = vpop.permute.xlu0 %277
        %281 = vset.pattern.permute.xlu0 0
        %282 = vperm.xlu0 %281, %v264
        %v283 = vpop.permute.xlu0 %282
        %vm285 = vcmask 130048
        %v287 = vsel %vm285, %v255, 0
        %v290 = vsel %vm285, %v256, 0
        %v293 = vsel %vm285, %v257, 0
        %v296 = vsel %vm285, %v258, 0
        %298 = vmatprep.subr.mxu0 %v252
        %299 = vmatpush1.msra.mxu0 %v251
        %300 = vmatprep.subr.mxu0 %v254
        %301 = vmatpush1.msra.mxu0 %v253
        %302 = vmatprep.subr.mxu0 0.0
        %303 = vmatpush1.msra.mxu0 0.0
        %304 = vmatprep.subr.mxu0 0.0
        %305 = vmatpush1.msra.mxu0 0.0
        %306 = vmatprep.subr.mxu0 0.0
        %307 = vmatpush1.msra.mxu0 0.0
        %308 = vmatprep.subr.mxu0 0.0
        %309 = vmatpush1.msra.mxu0 0.0
        %310 = vmatprep.subr.mxu0 0.0
        %311 = vmatpush1.msra.mxu0 0.0
        %312 = vmatprep.subr.mxu0 0.0
        %313 = vmatpush1.msra.mxu0 0.0
        %314 = vmatprep.subr.mxu0 0.0
        %315 = vmatpush1.msra.mxu0 0.0
        %316 = vmatprep.subr.mxu0 0.0
        %317 = vmatpush1.msra.mxu0 0.0
        %318 = vmatprep.subr.mxu0 0.0
        %319 = vmatpush1.msra.mxu0 0.0
        %320 = vmatprep.subr.mxu0 0.0
        %321 = vmatpush1.msra.mxu0 0.0
        %322 = vmatprep.subr.mxu0 0.0
        %323 = vmatpush1.msra.mxu0 0.0
        %324 = vmatprep.subr.mxu0 0.0
        %325 = vmatpush1.msra.mxu0 0.0
        %326 = vmatprep.subr.mxu0 0.0
        %327 = vmatpush1.msra.mxu0 0.0
        %328 = vmatprep.subr.mxu0 0.0
        %329 = vmatpush1.msra.mxu0 0.0
        %330 = vmatprep.subr.mxu0 0.0
        %331 = vmatpush1.msra.mxu0 0.0
        %332 = vmatprep.subr.mxu0 0.0
        %333 = vmatpush1.msra.mxu0 0.0
        %334 = vmatprep.subr.mxu0 0.0
        %335 = vmatpush1.msra.mxu0 0.0
        %336 = vmatprep.subr.mxu0 0.0
        %337 = vmatpush1.msra.mxu0 0.0
        %338 = vmatprep.subr.mxu0 0.0
        %339 = vmatpush1.msra.mxu0 0.0
        %340 = vmatprep.subr.mxu0 0.0
        %341 = vmatpush1.msra.mxu0 0.0
        %342 = vmatprep.subr.mxu0 0.0
        %343 = vmatpush1.msra.mxu0 0.0
        %344 = vmatprep.subr.mxu0 0.0
        %345 = vmatpush1.msra.mxu0 0.0
        %346 = vmatprep.subr.mxu0 0.0
        %347 = vmatpush1.msra.mxu0 0.0
        %348 = vmatprep.subr.mxu0 0.0
        %349 = vmatpush1.msra.mxu0 0.0
        %350 = vmatprep.subr.mxu0 0.0
        %351 = vmatpush1.msra.mxu0 0.0
        %352 = vmatprep.subr.mxu0 0.0
        %353 = vmatpush1.msra.mxu0 0.0
        %354 = vmatprep.subr.mxu0 0.0
        %355 = vmatpush1.msra.mxu0 0.0
        %356 = vmatprep.subr.mxu0 0.0
        %357 = vmatpush1.msra.mxu0 0.0
        %358 = vmatprep.subr.mxu0 0.0
        %359 = vmatpush1.msra.mxu0 0.0
        %360 = vmatprep.subr.mxu0 0.0
        %361 = vmatpush1.msra.mxu0 0.0
        %362 = vmatprep.mubr.f32.mxu0 0.0
        %363 = vmatmul.mubr.f32.gmra.mrb[0].mxu0 %v287
        %v364 = vpop.f32.mrb[0].mxu0
        %v365 = vadd.f32 %v268, %v364
        %v366 = vpop.f32.mrb[0].mxu0
        %v367 = vadd.f32 %v268, %v366
        %368 = vmatprep.mubr.f32.mxu0 0.0
        %369 = vmatmul.mubr.f32.gmra.mrb[0].mxu0 %v290
        %v370 = vpop.f32.mrb[0].mxu0
        %v371 = vadd.f32 %v273, %v370
        %v372 = vpop.f32.mrb[0].mxu0
        %v373 = vadd.f32 %v273, %v372
        %374 = vmatprep.mubr.f32.mxu0 0.0
        %375 = vmatmul.mubr.f32.gmra.mrb[0].mxu0 %v293
        %v376 = vpop.f32.mrb[0].mxu0
        %v377 = vadd.f32 %v278, %v376
        %v378 = vpop.f32.mrb[0].mxu0
        %v379 = vadd.f32 %v278, %v378
        %380 = vmatprep.mubr.f32.mxu0 0.0
        %381 = vmatmul.mubr.f32.gmra.mrb[0].mxu0 %v296
        %v382 = vpop.f32.mrb[0].mxu0
        %v383 = vadd.f32 %v283, %v382
        %v384 = vpop.f32.mrb[0].mxu0
        %v385 = vadd.f32 %v283, %v384
        %386 = vdwg.mxu0
        %v387 = vmax.f32 %v365, 0.0
        %v388 = vmax.f32 %v367, 0.0
        %v389 = vmax.f32 %v371, 0.0
        %v390 = vmax.f32 %v373, 0.0
        %v391 = vmax.f32 %v377, 0.0
        %v392 = vmax.f32 %v379, 0.0
        %v393 = vmax.f32 %v383, 0.0
        %v394 = vmax.f32 %v385, 0.0
        %v395 = vld [vmem:[%s4] sm:$0xff]
        %v396 = vld [vmem:[%s4 + $0x8] sm:$0xff]
        %398 = vset.pattern.permute.xlu0 0
        %399 = vperm.xlu0 %398, %v395
        %v400 = vpop.permute.xlu0 %399
        %403 = vset.pattern.permute.xlu0 0
        %404 = vperm.xlu0 %403, %v396
        %v405 = vpop.permute.xlu0 %404
        %vm407 = vcmask 261120
        %v409 = vsel %vm407, %v259, 0
        %v412 = vsel %vm407, %v260, 0
        %414 = vmatprep.subr.mxu0 %v388
        %415 = vmatpush1.msra.mxu0 %v387
        %416 = vmatprep.subr.mxu0 %v390
        %417 = vmatpush1.msra.mxu0 %v389
        %418 = vmatprep.subr.mxu0 %v392
        %419 = vmatpush1.msra.mxu0 %v391
        %420 = vmatprep.subr.mxu0 %v394
        %421 = vmatpush1.msra.mxu0 %v393
        %422 = vmatprep.subr.mxu0 0.0
        %423 = vmatpush1.msra.mxu0 0.0
        %424 = vmatprep.subr.mxu0 0.0
        %425 = vmatpush1.msra.mxu0 0.0
        %426 = vmatprep.subr.mxu0 0.0
        %427 = vmatpush1.msra.mxu0 0.0
        %428 = vmatprep.subr.mxu0 0.0
        %429 = vmatpush1.msra.mxu0 0.0
        %430 = vmatprep.subr.mxu0 0.0
        %431 = vmatpush1.msra.mxu0 0.0
        %432 = vmatprep.subr.mxu0 0.0
        %433 = vmatpush1.msra.mxu0 0.0
        %434 = vmatprep.subr.mxu0 0.0
        %435 = vmatpush1.msra.mxu0 0.0
        %436 = vmatprep.subr.mxu0 0.0
        %437 = vmatpush1.msra.mxu0 0.0
        %438 = vmatprep.subr.mxu0 0.0
        %439 = vmatpush1.msra.mxu0 0.0
        %440 = vmatprep.subr.mxu0 0.0
        %441 = vmatpush1.msra.mxu0 0.0
        %442 = vmatprep.subr.mxu0 0.0
        %443 = vmatpush1.msra.mxu0 0.0
        %444 = vmatprep.subr.mxu0 0.0
        %445 = vmatpush1.msra.mxu0 0.0
        %446 = vmatprep.subr.mxu0 0.0
        %447 = vmatpush1.msra.mxu0 0.0
        %448 = vmatprep.subr.mxu0 0.0
        %449 = vmatpush1.msra.mxu0 0.0
        %450 = vmatprep.subr.mxu0 0.0
        %451 = vmatpush1.msra.mxu0 0.0
        %452 = vmatprep.subr.mxu0 0.0
        %453 = vmatpush1.msra.mxu0 0.0
        %454 = vmatprep.subr.mxu0 0.0
        %455 = vmatpush1.msra.mxu0 0.0
        %456 = vmatprep.subr.mxu0 0.0
        %457 = vmatpush1.msra.mxu0 0.0
        %458 = vmatprep.subr.mxu0 0.0
        %459 = vmatpush1.msra.mxu0 0.0
        %460 = vmatprep.subr.mxu0 0.0
        %461 = vmatpush1.msra.mxu0 0.0
        %462 = vmatprep.subr.mxu0 0.0
        %463 = vmatpush1.msra.mxu0 0.0
        %464 = vmatprep.subr.mxu0 0.0
        %465 = vmatpush1.msra.mxu0 0.0
        %466 = vmatprep.subr.mxu0 0.0
        %467 = vmatpush1.msra.mxu0 0.0
        %468 = vmatprep.subr.mxu0 0.0
        %469 = vmatpush1.msra.mxu0 0.0
        %470 = vmatprep.subr.mxu0 0.0
        %471 = vmatpush1.msra.mxu0 0.0
        %472 = vmatprep.subr.mxu0 0.0
        %473 = vmatpush1.msra.mxu0 0.0
        %474 = vmatprep.subr.mxu0 0.0
        %475 = vmatpush1.msra.mxu0 0.0
        %476 = vmatprep.subr.mxu0 0.0
        %477 = vmatpush1.msra.mxu0 0.0
        %478 = vmatprep.mubr.f32.mxu0 0.0
        %479 = vmatmul.mubr.f32.gmra.mrb[0].mxu0 %v409
        %v480 = vpop.f32.mrb[0].mxu0
        %v481 = vadd.f32 %v400, %v480
        %v482 = vpop.f32.mrb[0].mxu0
        %v483 = vadd.f32 %v400, %v482
        %484 = vmatprep.mubr.f32.mxu0 0.0
        %485 = vmatmul.mubr.f32.gmra.mrb[0].mxu0 %v412
        %v486 = vpop.f32.mrb[0].mxu0
        %v487 = vadd.f32 %v405, %v486
        %v488 = vpop.f32.mrb[0].mxu0
        %v489 = vadd.f32 %v405, %v488
        %490 = vdwg.mxu0
        %491 = vst [vmem:[%s248] sm:$0xff] %v481
        %492 = vst [vmem:[%s248 + $0x8] sm:$0xff] %v483
        %493 = vst [vmem:[%s248 + $0x10] sm:$0xff] %v487
        %494 = vst [vmem:[%s248 + $0x18] sm:$0xff] %v489
        %s495 = sand.u32 %s137, 1
        %s496 = scalar_lea.sflag [#allocation4], %s495
        %s497 = sand.u32 %s137, 1
        %s498 = smul.addr %s497, 32
        %s499 = scalar_lea.vmem [#allocation3], %s498
        // Predicated region
        $region64: #{tpu_custom_call.1} parent=58 // pred_check
          %p500 = pneg %p147
        $region65: #{tpu_custom_call.1} parent=58 // pred_check_branch
          %502 = sbr.rel (%p500) target = $region67
        $region66: #{tpu_custom_call.1} parent=58 // pred_region
          %s503 = smul.u32 2, %s19
          %s505 = ssub.s32 512, 512
          %506 = vsyncadd %s496, %s505
          %s507 = smul.addr %s503, 128
          %s508 = scalar_lea.hbm %s5, %s507
          %s509 = sshll.u32 %s499, 4
          %s510 = int_to_ptr.vmem [resolvable:$true] %s509
          %515 = dma.vmem_to_hbm [thread:$0]  %s510, 512, %s508, %s496, 256, 512, 16
        $region67: #{tpu_custom_call.1} parent=58 // pred_fallthru
          _
      $region59: #{tpu_custom_call.1} parent=5 // pred_fallthru
        _
      %p516 = scmp.le.s32.totalorder 2, %s14
      // Predicated region
      $region68: #{tpu_custom_call.1} parent=5 // pred_check
        %p517 = pneg %p516
      $region69: #{tpu_custom_call.1} parent=5 // pred_check_branch
        %519 = sbr.rel (%p517) target = $region71
      $region70: #{tpu_custom_call.1} parent=5 // pred_region
        %s520 = ssub.s32 %s14, 2
        // Predicated region
        $region72: #{tpu_custom_call.1} parent=70 // pred_check
          %p521 = pneg %p153
        $region73: #{tpu_custom_call.1} parent=70 // pred_check_branch
          %523 = sbr.rel (%p521) target = $region75
        $region74: #{tpu_custom_call.1} parent=70 // pred_region
          %s524 = sand.u32 %s138, 1
          %s525 = scalar_lea.sflag [#allocation4], %s524
          %s526 = sand.u32 %s138, 1
          %s527 = smul.addr %s526, 32
          %s528 = scalar_lea.vmem [#allocation3], %s527
          %529 = dma.done %s525, 512
        $region75: #{tpu_custom_call.1} parent=70 // pred_fallthru
          _
      $region71: #{tpu_custom_call.1} parent=5 // pred_fallthru
        _
    $region6: #{tpu_custom_call.1} parent=1 // loop_footer
      %s18 = sadd.s32 1, %s14
    $region7: #{tpu_custom_call.1} parent=1 // loop_footer_branch
      %13 = sbr.rel target = $region3
    $region8: #{tpu_custom_call.1} parent=1 // loop_exit
      _
    %530 = vsyncpa [#allocation4], 1
    %s531 = scalar_lea.sflag [#allocation4], 1
    %532 = vsyncpa %s531, 1

</llo_original>
